<compile_context>
chip_gen: v6e
topology: v6e:2x2x1
jax: 0.10.0
libtpu: 0.0.40
codegen_flags: <defaults>
</compile_context>

<pallas_src>
import jax
import jax.numpy as jnp
from jax.experimental import pallas as pl
from jax.experimental.pallas import tpu as pltpu

IMG_FLAT = 28 * 28            # 784
ENCODER_HIDDEN = 256
LATENT = 64                   # latent_space == l1 input_size
L1_OUT = 64
NUM_CLASSES = 10
PAD_N = 128                   # lane-dense / MXU-width padding for the head


def _round_up(x, m):
    return ((x + m - 1) // m) * m


def _choose_tiling(B, *, min_tile=256, max_tile=2048, target_steps=8):
    """Pick (tile_b, padded_B).

    Goals (in order): minimize padded rows (pure waste in a bandwidth-bound
    kernel), get >= `target_steps` grid steps when the batch is big enough
    (v7x megacore + pipeline fill), keep tiles in [min_tile, max_tile] so
    per-step overhead is amortized and VMEM stays bounded.
    """
    b8 = _round_up(B, 8)                       # sublane alignment
    if b8 <= min_tile:
        return b8, b8                          # tiny batch: single step, zero waste
    steps = max(1, min(target_steps, b8 // min_tile))
    tb = _round_up(-(-b8 // steps), 8)         # ceil-div, sublane aligned
    tb = min(tb, max_tile)
    b_pad = _round_up(b8, tb)
    return tb, b_pad


def topmodel_kernel(x_ref,                     # (TB, 784) bf16
                    we1_ref, be1_ref,          # encoder fc1: 784 -> 256   (W bf16, b f32)
                    wf_ref, bf_ref,            # fused mu+l1: 256 -> 128pad (W bf16, b f32)
                    w2_ref, b2_ref,            # l2: 128pad -> 128pad       (W bf16, b f32)
                    raw_ref):                  # (TB, 128) f32
    x = x_ref[...]                                                  # bf16

    # encoder fc1 + ReLU
    h = jnp.dot(x, we1_ref[...], preferred_element_type=jnp.float32) + be1_ref[...]
    h = jnp.maximum(h, 0.0)                                         # (TB, 256) f32

    # fused (mu head . l1) + ReLU   (padded cols are exactly zero)
    z = jnp.dot(h.astype(jnp.bfloat16), wf_ref[...],
                preferred_element_type=jnp.float32) + bf_ref[...]
    z = jnp.maximum(z, 0.0)                                         # (TB, 128) f32

    # l2 (padded to 128 output lanes); sigmoid is done in the wrapper on (B,10)
    raw_ref[...] = jnp.dot(z.astype(jnp.bfloat16), w2_ref[...],
                           preferred_element_type=jnp.float32) + b2_ref[...]


def topmodel_forward(x_nchw, params):
    """x_nchw: (B, 1, 28, 28). Returns (logits, raw), each (B, 10) float32."""
    B = x_nchw.shape[0]
    # view(-1, 28*28) + bf16 cast (ideally x already arrives in bf16 upstream).
    x_flat = x_nchw.reshape(B, IMG_FLAT).astype(jnp.bfloat16)

    (we1, be1, wmu, bmu, w1, b1, w2, b2) = params

    # ---- weight preparation (wrapper-side, cheap, jit-able) -------------------
    # Fuse mu head and l1 (no nonlinearity between them in the original model).
    wf = wmu @ w1                                                 # (256, 64)
    bf = bmu @ w1 + b1                                            # (1, 64)
    # Pad head N-dims to 128 with zero columns/rows (lane-dense, full MXU width).
    wf_p = jnp.zeros((ENCODER_HIDDEN, PAD_N), jnp.float32).at[:, :L1_OUT].set(wf)
    bf_p = jnp.zeros((1, PAD_N), jnp.float32).at[:, :L1_OUT].set(bf)
    w2_p = jnp.zeros((PAD_N, PAD_N), jnp.float32).at[:L1_OUT, :NUM_CLASSES].set(w2)
    b2_p = jnp.zeros((1, PAD_N), jnp.float32).at[:, :NUM_CLASSES].set(b2)
    # bf16 weights (halve weight DMA; native bf16 MXU path). Biases stay f32.
    we1_b = we1.astype(jnp.bfloat16)
    wf_b = wf_p.astype(jnp.bfloat16)
    w2_b = w2_p.astype(jnp.bfloat16)

    # ---- batch tiling ---------------------------------------------------------
    tb, b_pad = _choose_tiling(B)
    if b_pad != B:
        x_flat = jnp.pad(x_flat, ((0, b_pad - B), (0, 0)))
    grid = (b_pad // tb,)

    const2d = lambda arr: pl.BlockSpec(arr.shape, lambda i: (0, 0))

    flops = 2 * b_pad * (IMG_FLAT * ENCODER_HIDDEN
                         + ENCODER_HIDDEN * PAD_N
                         + PAD_N * PAD_N)
    bytes_weights = (2 * IMG_FLAT * ENCODER_HIDDEN          # We1 bf16
                     + 2 * ENCODER_HIDDEN * PAD_N           # Wf bf16
                     + 2 * PAD_N * PAD_N                    # W2 bf16
                     + 4 * (ENCODER_HIDDEN + 2 * PAD_N))    # biases f32
    bytes_accessed = (2 * b_pad * IMG_FLAT                  # x (bf16)
                      + bytes_weights
                      + 4 * b_pad * PAD_N)                  # raw out (f32)

    raw_p = pl.pallas_call(
        topmodel_kernel,
        grid=grid,
        out_shape=jax.ShapeDtypeStruct((b_pad, PAD_N), jnp.float32),
        in_specs=[
            pl.BlockSpec((tb, IMG_FLAT), lambda i: (i, 0)),       # x: batch-tiled
            const2d(we1_b), const2d(be1),                         # weights: resident
            const2d(wf_b), const2d(bf_p),
            const2d(w2_b), const2d(b2_p),
        ],
        out_specs=pl.BlockSpec((tb, PAD_N), lambda i: (i, 0)),
        compiler_params=pltpu.CompilerParams(
            dimension_semantics=("parallel",),                    # 2 TCs on v7x
            vmem_limit_bytes=32 * 1024 * 1024,                    # ample; safe on v7x 64 MiB
        ),
        cost_estimate=pl.CostEstimate(
            flops=flops,
            transcendentals=0,                                    # sigmoid moved to wrapper
            bytes_accessed=bytes_accessed,
        ),
    )(x_flat, we1_b, be1, wf_b, bf_p, w2_b, b2_p)

    raw = raw_p[:B, :NUM_CLASSES]                                 # drop pad lanes/rows
    logits = jax.nn.sigmoid(raw)                                  # cheap, on (B, 10) only
    return logits, raw


def init_params(key):
    """Deterministic synthetic parameters (shapes from the module __init__)."""
    ks = jax.random.split(key, 8)
    scale = 0.02
    we1 = scale * jax.random.normal(ks[0], (IMG_FLAT, ENCODER_HIDDEN), jnp.float32)
    be1 = scale * jax.random.normal(ks[1], (1, ENCODER_HIDDEN), jnp.float32)
    wmu = scale * jax.random.normal(ks[2], (ENCODER_HIDDEN, LATENT), jnp.float32)
    bmu = scale * jax.random.normal(ks[3], (1, LATENT), jnp.float32)
    w1 = scale * jax.random.normal(ks[4], (LATENT, L1_OUT), jnp.float32)
    b1 = scale * jax.random.normal(ks[5], (1, L1_OUT), jnp.float32)
    w2 = scale * jax.random.normal(ks[6], (L1_OUT, NUM_CLASSES), jnp.float32)
    b2 = scale * jax.random.normal(ks[7], (1, NUM_CLASSES), jnp.float32)
    return (we1, be1, wmu, bmu, w1, b1, w2, b2)


def reference_forward_f32(x_nchw, params):
    """Exact f32, unfused reference (original module semantics)."""
    (we1, be1, wmu, bmu, w1, b1, w2, b2) = params
    x = x_nchw.reshape(x_nchw.shape[0], IMG_FLAT)
    h = jnp.maximum(x @ we1 + be1, 0.0)
    mu = h @ wmu + bmu
    z = jnp.maximum(mu @ w1 + b1, 0.0)
    raw = z @ w2 + b2
    return jax.nn.sigmoid(raw), raw


def reference_forward_bf16(x_nchw, params):
    """Reference mirroring the kernel numerics (fused mu/l1, bf16 inputs, f32 accum)."""
    (we1, be1, wmu, bmu, w1, b1, w2, b2) = params
    x = x_nchw.reshape(x_nchw.shape[0], IMG_FLAT)
    wf = wmu @ w1
    bf = bmu @ w1 + b1
    h = jnp.maximum(
        jnp.dot(x.astype(jnp.bfloat16), we1.astype(jnp.bfloat16),
                preferred_element_type=jnp.float32) + be1, 0.0)
    z = jnp.maximum(
        jnp.dot(h.astype(jnp.bfloat16), wf.astype(jnp.bfloat16),
                preferred_element_type=jnp.float32) + bf, 0.0)
    raw = jnp.dot(z.astype(jnp.bfloat16), w2.astype(jnp.bfloat16),
                  preferred_element_type=jnp.float32) + b2
    return jax.nn.sigmoid(raw), raw


if __name__ == "__main__":
    key = jax.random.PRNGKey(0)
    k_x, k_p = jax.random.split(key)

    B = 8
    x = jax.random.normal(k_x, (B, 1, 28, 28), jnp.float32)   # NCHW, MNIST-like
    params = init_params(k_p)

    fwd = jax.jit(topmodel_forward)            # lets reshape/cast/pad/sigmoid fuse
    logits, raw = fwd(x, params)
    jax.block_until_ready((logits, raw))

    assert logits.shape == (B, NUM_CLASSES) and raw.shape == (B, NUM_CLASSES)

    # Primary check: against a reference with matching bf16/fused numerics.
    ref_logits_bf, ref_raw_bf = reference_forward_bf16(x, params)
    assert jnp.allclose(logits, ref_logits_bf, atol=1e-3, rtol=1e-3)
    assert jnp.allclose(raw, ref_raw_bf, atol=1e-3, rtol=1e-3)

    # Sanity check: against the exact f32 unfused path (looser tolerance for bf16).
    ref_logits, ref_raw = reference_forward_f32(x, params)
    assert jnp.allclose(logits, ref_logits, atol=1e-2)
    assert jnp.allclose(raw, ref_raw, atol=1e-2)

    print("KERNEL_OK")
</pallas_src>

<mosaic_0001>
module attributes {stable_mosaic.version = 11 : i64} {
  func.func @topmodel_kernel(%arg0: i32, %arg1: memref<8x784xbf16, #tpu.memory_space<vmem>>, %arg2: memref<784x256xbf16, #tpu.memory_space<vmem>>, %arg3: memref<1x256xf32, #tpu.memory_space<vmem>>, %arg4: memref<256x128xbf16, #tpu.memory_space<vmem>>, %arg5: memref<1x128xf32, #tpu.memory_space<vmem>>, %arg6: memref<128x128xbf16, #tpu.memory_space<vmem>>, %arg7: memref<1x128xf32, #tpu.memory_space<vmem>>, %arg8: memref<8x128xf32, #tpu.memory_space<vmem>>) attributes {dimension_semantics = [#tpu.dimension_semantics<parallel>], iteration_bounds = array<i64: 1>, scalar_prefetch = 0 : i64, scratch_operands = 0 : i64, tpu.core_type = #tpu.core_type<tc>, window_params = [{transform_indices = @transform_0, window_bounds = array<i64: 8, 784>}, {pipeline_mode = #tpu.pipeline_mode<synchronous>, transform_indices = @transform_1, window_bounds = array<i64: 784, 256>}, {pipeline_mode = #tpu.pipeline_mode<synchronous>, transform_indices = @transform_2, window_bounds = array<i64: 1, 256>}, {pipeline_mode = #tpu.pipeline_mode<synchronous>, transform_indices = @transform_3, window_bounds = array<i64: 256, 128>}, {pipeline_mode = #tpu.pipeline_mode<synchronous>, transform_indices = @transform_4, window_bounds = array<i64: 1, 128>}, {pipeline_mode = #tpu.pipeline_mode<synchronous>, transform_indices = @transform_5, window_bounds = array<i64: 128, 128>}, {pipeline_mode = #tpu.pipeline_mode<synchronous>, transform_indices = @transform_6, window_bounds = array<i64: 1, 128>}, {transform_indices = @transform_7, window_bounds = array<i64: 8, 128>}]} {
    %c0 = arith.constant 0 : index
    %c0_0 = arith.constant 0 : index
    %0 = vector.load %arg1[%c0, %c0_0] : memref<8x784xbf16, #tpu.memory_space<vmem>>, vector<8x784xbf16>
    %c0_1 = arith.constant 0 : index
    %c0_2 = arith.constant 0 : index
    %1 = vector.load %arg2[%c0_1, %c0_2] : memref<784x256xbf16, #tpu.memory_space<vmem>>, vector<784x256xbf16>
    %cst = arith.constant dense<0.000000e+00> : vector<8x256xf32>
    %2 = tpu.matmul %0, %1, %cst {dimension_numbers = #tpu.dot_dimension_numbers<[1], [0], [0], [1], [0, 0, 1, 1], [], []>} : vector<8x784xbf16>, vector<784x256xbf16>, vector<8x256xf32> -> vector<8x256xf32>
    %c0_3 = arith.constant 0 : index
    %c0_4 = arith.constant 0 : index
    %3 = vector.load %arg3[%c0_3, %c0_4] : memref<1x256xf32, #tpu.memory_space<vmem>>, vector<1x256xf32>
    %4 = vector.broadcast %3 : vector<1x256xf32> to vector<8x256xf32>
    %5 = arith.addf %2, %4 : vector<8x256xf32>
    %cst_5 = arith.constant 0.000000e+00 : f32
    %6 = vector.broadcast %cst_5 : f32 to vector<8x256xf32>
    %7 = arith.maximumf %5, %6 : vector<8x256xf32>
    %8 = arith.truncf %7 : vector<8x256xf32> to vector<8x256xbf16>
    %c0_6 = arith.constant 0 : index
    %c0_7 = arith.constant 0 : index
    %9 = vector.load %arg4[%c0_6, %c0_7] : memref<256x128xbf16, #tpu.memory_space<vmem>>, vector<256x128xbf16>
    %cst_8 = arith.constant dense<0.000000e+00> : vector<8x128xf32>
    %10 = tpu.matmul %8, %9, %cst_8 {dimension_numbers = #tpu.dot_dimension_numbers<[1], [0], [0], [1], [0, 0, 1, 1], [], []>} : vector<8x256xbf16>, vector<256x128xbf16>, vector<8x128xf32> -> vector<8x128xf32>
    %c0_9 = arith.constant 0 : index
    %c0_10 = arith.constant 0 : index
    %11 = vector.load %arg5[%c0_9, %c0_10] : memref<1x128xf32, #tpu.memory_space<vmem>>, vector<1x128xf32>
    %12 = vector.broadcast %11 : vector<1x128xf32> to vector<8x128xf32>
    %13 = arith.addf %10, %12 : vector<8x128xf32>
    %cst_11 = arith.constant 0.000000e+00 : f32
    %14 = vector.broadcast %cst_11 : f32 to vector<8x128xf32>
    %15 = arith.maximumf %13, %14 : vector<8x128xf32>
    %16 = arith.truncf %15 : vector<8x128xf32> to vector<8x128xbf16>
    %c0_12 = arith.constant 0 : index
    %c0_13 = arith.constant 0 : index
    %17 = vector.load %arg6[%c0_12, %c0_13] : memref<128x128xbf16, #tpu.memory_space<vmem>>, vector<128x128xbf16>
    %cst_14 = arith.constant dense<0.000000e+00> : vector<8x128xf32>
    %18 = tpu.matmul %16, %17, %cst_14 {dimension_numbers = #tpu.dot_dimension_numbers<[1], [0], [0], [1], [0, 0, 1, 1], [], []>} : vector<8x128xbf16>, vector<128x128xbf16>, vector<8x128xf32> -> vector<8x128xf32>
    %c0_15 = arith.constant 0 : index
    %c0_16 = arith.constant 0 : index
    %19 = vector.load %arg7[%c0_15, %c0_16] : memref<1x128xf32, #tpu.memory_space<vmem>>, vector<1x128xf32>
    %20 = vector.broadcast %19 : vector<1x128xf32> to vector<8x128xf32>
    %21 = arith.addf %18, %20 : vector<8x128xf32>
    %c0_17 = arith.constant 0 : index
    %c0_18 = arith.constant 0 : index
    %22 = vector.load %arg8[%c0_17, %c0_18] : memref<8x128xf32, #tpu.memory_space<vmem>>, vector<8x128xf32>
    tpu.vector_store %arg8[%c0_17, %c0_18], %21 {strides = array<i32>} : memref<8x128xf32, #tpu.memory_space<vmem>>, vector<8x128xf32>,
    return
  }
  func.func @transform_0(%arg0: i32) -> (i32, i32) {
    %c0_i32 = arith.constant 0 : i32
    %c0_i32_0 = arith.constant 0 : i32
    return %arg0, %c0_i32 : i32, i32
  }
  func.func @transform_1(%arg0: i32) -> (i32, i32) {
    %c0_i32 = arith.constant 0 : i32
    %c0_i32_0 = arith.constant 0 : i32
    %c0_i32_1 = arith.constant 0 : i32
    return %c0_i32, %c0_i32_0 : i32, i32
  }
  func.func @transform_2(%arg0: i32) -> (i32, i32) {
    %c0_i32 = arith.constant 0 : i32
    %c0_i32_0 = arith.constant 0 : i32
    %c0_i32_1 = arith.constant 0 : i32
    return %c0_i32, %c0_i32_0 : i32, i32
  }
  func.func @transform_3(%arg0: i32) -> (i32, i32) {
    %c0_i32 = arith.constant 0 : i32
    %c0_i32_0 = arith.constant 0 : i32
    %c0_i32_1 = arith.constant 0 : i32
    return %c0_i32, %c0_i32_0 : i32, i32
  }
  func.func @transform_4(%arg0: i32) -> (i32, i32) {
    %c0_i32 = arith.constant 0 : i32
    %c0_i32_0 = arith.constant 0 : i32
    %c0_i32_1 = arith.constant 0 : i32
    return %c0_i32, %c0_i32_0 : i32, i32
  }
  func.func @transform_5(%arg0: i32) -> (i32, i32) {
    %c0_i32 = arith.constant 0 : i32
    %c0_i32_0 = arith.constant 0 : i32
    %c0_i32_1 = arith.constant 0 : i32
    return %c0_i32, %c0_i32_0 : i32, i32
  }
  func.func @transform_6(%arg0: i32) -> (i32, i32) {
    %c0_i32 = arith.constant 0 : i32
    %c0_i32_0 = arith.constant 0 : i32
    %c0_i32_1 = arith.constant 0 : i32
    return %c0_i32, %c0_i32_0 : i32, i32
  }
  func.func @transform_7(%arg0: i32) -> (i32, i32) {
    %c0_i32 = arith.constant 0 : i32
    %c0_i32_0 = arith.constant 0 : i32
    return %arg0, %c0_i32 : i32, i32
  }
}

</mosaic_0001>

<llo_original>
// kernel: topmodel_forward.1
$region0: #{topmodel_forward.1}
  #allocation0 [shape = 'u32[]', space=smem, size = 0x4, offset = 0x4, fixed_abs, tag = 'smem constant byte address 0x4 - core index']
  #allocation1 [shape = 'u32[144,128]{1,0:T(1,128)}', space=vmem, size = 0x12000, scoped, tag = 'internal scratch']
  %s0 = inlined_call_operand.vmem [shape: bf16[8,784], index: 0, kind: input, shape index: {}]
  %s1 = inlined_call_operand.vmem [shape: bf16[784,256], index: 1, kind: input, shape index: {}]
  %s2 = inlined_call_operand.vmem [shape: f32[1,256], index: 2, kind: input, shape index: {}]
  %s3 = inlined_call_operand.vmem [shape: bf16[256,128], index: 3, kind: input, shape index: {}]
  %s4 = inlined_call_operand.vmem [shape: f32[1,128], index: 4, kind: input, shape index: {}]
  %s5 = inlined_call_operand.vmem [shape: bf16[128,128], index: 5, kind: input, shape index: {}]
  %s6 = inlined_call_operand.vmem [shape: f32[1,128], index: 6, kind: input, shape index: {}]
  %s7 = inlined_call_operand.vmem [shape: f32[8,128], index: 7, kind: output, shape index: {}]
  %s8 = sld [smem:[#allocation0]]
  $region38: #{topmodel_forward.1} parent=0
    _
  %s10 = ssub.s32 1, %s8
  %s11 = scalar_select 0, %s10, %s8
  // Predicated region
  $region2: #{topmodel_forward.1} parent=0 // pred_check
    _
  $region3: #{topmodel_forward.1} parent=0 // pred_check_branch
    %13 = sbr.rel (0) target = $region5
  $region4: #{topmodel_forward.1} parent=0 // pred_region
    _
  $region5: #{topmodel_forward.1} parent=0 // pred_fallthru
    _
  // Predicated region
  $region6: #{topmodel_forward.1} parent=0 // pred_check
    _
  $region7: #{topmodel_forward.1} parent=0 // pred_check_branch
    %15 = sbr.rel (0) target = $region9
  $region8: #{topmodel_forward.1} parent=0 // pred_region
    _
  $region9: #{topmodel_forward.1} parent=0 // pred_fallthru
    _
  // Predicated region
  $region10: #{topmodel_forward.1} parent=0 // pred_check
    _
  $region11: #{topmodel_forward.1} parent=0 // pred_check_branch
    %17 = sbr.rel (0) target = $region13
  $region12: #{topmodel_forward.1} parent=0 // pred_region
    _
  $region13: #{topmodel_forward.1} parent=0 // pred_fallthru
    _
  // Predicated region
  $region14: #{topmodel_forward.1} parent=0 // pred_check
    _
  $region15: #{topmodel_forward.1} parent=0 // pred_check_branch
    %19 = sbr.rel (0) target = $region17
  $region16: #{topmodel_forward.1} parent=0 // pred_region
    _
  $region17: #{topmodel_forward.1} parent=0 // pred_fallthru
    _
  // Predicated region
  $region18: #{topmodel_forward.1} parent=0 // pred_check
    _
  $region19: #{topmodel_forward.1} parent=0 // pred_check_branch
    %21 = sbr.rel (0) target = $region21
  $region20: #{topmodel_forward.1} parent=0 // pred_region
    _
  $region21: #{topmodel_forward.1} parent=0 // pred_fallthru
    _
  // Predicated region
  $region22: #{topmodel_forward.1} parent=0 // pred_check
    _
  $region23: #{topmodel_forward.1} parent=0 // pred_check_branch
    %23 = sbr.rel (0) target = $region25
  $region24: #{topmodel_forward.1} parent=0 // pred_region
    _
  $region25: #{topmodel_forward.1} parent=0 // pred_fallthru
    _
  // Predicated region
  $region26: #{topmodel_forward.1} parent=0 // pred_check
    _
  $region27: #{topmodel_forward.1} parent=0 // pred_check_branch
    %25 = sbr.rel (0) target = $region29
  $region28: #{topmodel_forward.1} parent=0 // pred_region
    _
  $region29: #{topmodel_forward.1} parent=0 // pred_fallthru
    _
  %v27 = vld [vmem:[%s0] sm:$0xff]
  %v28 = vld [vmem:[%s0 + $0x8] sm:$0xff]
  %v29 = vld [vmem:[%s0 + $0x10] sm:$0xff]
  %v30 = vld [vmem:[%s0 + $0x18] sm:$0xf]
  %v31 = vld [vmem:[%s1] sm:$0xff]
  %v32 = vld [vmem:[%s1 + $0x8] sm:$0xff]
  %v33 = vld [vmem:[%s1 + $0x10] sm:$0xff]
  %v34 = vld [vmem:[%s1 + $0x18] sm:$0xff]
  %v35 = vld [vmem:[%s1 + $0x20] sm:$0xff]
  %v36 = vld [vmem:[%s1 + $0x28] sm:$0xff]
  %v37 = vld [vmem:[%s1 + $0x30] sm:$0xff]
  %v38 = vld [vmem:[%s1 + $0x38] sm:$0xff]
  %v39 = vld [vmem:[%s1 + $0x40] sm:$0xff]
  %v40 = vld [vmem:[%s1 + $0x48] sm:$0xff]
  %v41 = vld [vmem:[%s1 + $0x50] sm:$0xff]
  %v42 = vld [vmem:[%s1 + $0x58] sm:$0xff]
  %v43 = vld [vmem:[%s1 + $0x60] sm:$0xff]
  %v44 = vld [vmem:[%s1 + $0x68] sm:$0xff]
  %v45 = vld [vmem:[%s1 + $0x70] sm:$0xff]
  %v46 = vld [vmem:[%s1 + $0x78] sm:$0xff]
  %v47 = vld [vmem:[%s1 + $0x80] sm:$0xff]
  %v48 = vld [vmem:[%s1 + $0x88] sm:$0xff]
  %v49 = vld [vmem:[%s1 + $0x90] sm:$0xff]
  %v50 = vld [vmem:[%s1 + $0x98] sm:$0xff]
  %v51 = vld [vmem:[%s1 + $0xa0] sm:$0xff]
  %v52 = vld [vmem:[%s1 + $0xa8] sm:$0xff]
  %v53 = vld [vmem:[%s1 + $0xb0] sm:$0xff]
  %v54 = vld [vmem:[%s1 + $0xb8] sm:$0xff]
  %v55 = vld [vmem:[%s1 + $0xc0] sm:$0xff]
  %v56 = vld [vmem:[%s1 + $0xc8] sm:$0xff]
  %v57 = vld [vmem:[%s1 + $0xd0] sm:$0xff]
  %v58 = vld [vmem:[%s1 + $0xd8] sm:$0xff]
  %v59 = vld [vmem:[%s1 + $0xe0] sm:$0xff]
  %v60 = vld [vmem:[%s1 + $0xe8] sm:$0xff]
  %v61 = vld [vmem:[%s1 + $0xf0] sm:$0xff]
  %v62 = vld [vmem:[%s1 + $0xf8] sm:$0xff]
  %v63 = vld [vmem:[%s1 + $0x100] sm:$0xff]
  %v64 = vld [vmem:[%s1 + $0x108] sm:$0xff]
  %v65 = vld [vmem:[%s1 + $0x110] sm:$0xff]
  %v66 = vld [vmem:[%s1 + $0x118] sm:$0xff]
  %v67 = vld [vmem:[%s1 + $0x120] sm:$0xff]
  %v68 = vld [vmem:[%s1 + $0x128] sm:$0xff]
  %v69 = vld [vmem:[%s1 + $0x130] sm:$0xff]
  %v70 = vld [vmem:[%s1 + $0x138] sm:$0xff]
  %v71 = vld [vmem:[%s1 + $0x140] sm:$0xff]
  %v72 = vld [vmem:[%s1 + $0x148] sm:$0xff]
  %v73 = vld [vmem:[%s1 + $0x150] sm:$0xff]
  %v74 = vld [vmem:[%s1 + $0x158] sm:$0xff]
  %v75 = vld [vmem:[%s1 + $0x160] sm:$0xff]
  %v76 = vld [vmem:[%s1 + $0x168] sm:$0xff]
  %v77 = vld [vmem:[%s1 + $0x170] sm:$0xff]
  %v78 = vld [vmem:[%s1 + $0x178] sm:$0xff]
  %v79 = vld [vmem:[%s1 + $0x180] sm:$0xff]
  %v80 = vld [vmem:[%s1 + $0x188] sm:$0xff]
  %v81 = vld [vmem:[%s1 + $0x190] sm:$0xff]
  %v82 = vld [vmem:[%s1 + $0x198] sm:$0xff]
  %v83 = vld [vmem:[%s1 + $0x1a0] sm:$0xff]
  %v84 = vld [vmem:[%s1 + $0x1a8] sm:$0xff]
  %v85 = vld [vmem:[%s1 + $0x1b0] sm:$0xff]
  %v86 = vld [vmem:[%s1 + $0x1b8] sm:$0xff]
  %v87 = vld [vmem:[%s1 + $0x1c0] sm:$0xff]
  %v88 = vld [vmem:[%s1 + $0x1c8] sm:$0xff]
  %v89 = vld [vmem:[%s1 + $0x1d0] sm:$0xff]
  %v90 = vld [vmem:[%s1 + $0x1d8] sm:$0xff]
  %v91 = vld [vmem:[%s1 + $0x1e0] sm:$0xff]
  %v92 = vld [vmem:[%s1 + $0x1e8] sm:$0xff]
  %v93 = vld [vmem:[%s1 + $0x1f0] sm:$0xff]
  %v94 = vld [vmem:[%s1 + $0x1f8] sm:$0xff]
  %v95 = vld [vmem:[%s1 + $0x200] sm:$0xff]
  %v96 = vld [vmem:[%s1 + $0x208] sm:$0xff]
  %v97 = vld [vmem:[%s1 + $0x210] sm:$0xff]
  %v98 = vld [vmem:[%s1 + $0x218] sm:$0xff]
  %v99 = vld [vmem:[%s1 + $0x220] sm:$0xff]
  %v100 = vld [vmem:[%s1 + $0x228] sm:$0xff]
  %v101 = vld [vmem:[%s1 + $0x230] sm:$0xff]
  %v102 = vld [vmem:[%s1 + $0x238] sm:$0xff]
  %v103 = vld [vmem:[%s1 + $0x240] sm:$0xff]
  %v104 = vld [vmem:[%s1 + $0x248] sm:$0xff]
  %v105 = vld [vmem:[%s1 + $0x250] sm:$0xff]
  %v106 = vld [vmem:[%s1 + $0x258] sm:$0xff]
  %v107 = vld [vmem:[%s1 + $0x260] sm:$0xff]
  %v108 = vld [vmem:[%s1 + $0x268] sm:$0xff]
  %v109 = vld [vmem:[%s1 + $0x270] sm:$0xff]
  %v110 = vld [vmem:[%s1 + $0x278] sm:$0xff]
  %v111 = vld [vmem:[%s1 + $0x280] sm:$0xff]
  %v112 = vld [vmem:[%s1 + $0x288] sm:$0xff]
  %v113 = vld [vmem:[%s1 + $0x290] sm:$0xff]
  %v114 = vld [vmem:[%s1 + $0x298] sm:$0xff]
  %v115 = vld [vmem:[%s1 + $0x2a0] sm:$0xff]
  %v116 = vld [vmem:[%s1 + $0x2a8] sm:$0xff]
  %v117 = vld [vmem:[%s1 + $0x2b0] sm:$0xff]
  %v118 = vld [vmem:[%s1 + $0x2b8] sm:$0xff]
  %v119 = vld [vmem:[%s1 + $0x2c0] sm:$0xff]
  %v120 = vld [vmem:[%s1 + $0x2c8] sm:$0xff]
  %v121 = vld [vmem:[%s1 + $0x2d0] sm:$0xff]
  %v122 = vld [vmem:[%s1 + $0x2d8] sm:$0xff]
  %v123 = vld [vmem:[%s1 + $0x2e0] sm:$0xff]
  %v124 = vld [vmem:[%s1 + $0x2e8] sm:$0xff]
  %v125 = vld [vmem:[%s1 + $0x2f0] sm:$0xff]
  %v126 = vld [vmem:[%s1 + $0x2f8] sm:$0xff]
  %v127 = vld [vmem:[%s1 + $0x300] sm:$0xff]
  %v128 = vld [vmem:[%s1 + $0x308] sm:$0xff]
  %v129 = vld [vmem:[%s2] sm:$0x3]
  %v131 = vlaneseq
  %v132 = vshrl.u32 %v131, 7
  %v133 = vsub.s32 0, %v132
  %v134 = vrot.slane %v129, %v133
  %v135 = vlaneseq
  %v136 = vshrl.u32 %v135, 7
  %v137 = vsub.s32 1, %v136
  %v138 = vrot.slane %v129, %v137
  %v145 = vunpack.c.l.b16 %v27
  %v146 = vunpack.c.h.b16 %v27
  %v147 = vunpack.c.l.b16 %v28
  %v148 = vunpack.c.h.b16 %v28
  %v149 = vunpack.c.l.b16 %v29
  %v150 = vunpack.c.h.b16 %v29
  %v151 = vunpack.c.l.b16 %v30
  %v152 = vpack.c.b16 %v145, %v145
  %v153 = vpack.c.b16 %v146, %v146
  %v154 = vpack.c.b16 %v147, %v147
  %v155 = vpack.c.b16 %v148, %v148
  %v156 = vpack.c.b16 %v149, %v149
  %v157 = vpack.c.b16 %v150, %v150
  %v158 = vpack.c.b16 %v151, %v151
  %v263 = vunpack.c.l.b16 %v31
  %v264 = vunpack.c.h.b16 %v31
  %v265 = vunpack.c.l.b16 %v32
  %v266 = vunpack.c.h.b16 %v32
  %v267 = vunpack.c.l.b16 %v33
  %v268 = vunpack.c.h.b16 %v33
  %v269 = vunpack.c.l.b16 %v34
  %v270 = vunpack.c.h.b16 %v34
  %v271 = vunpack.c.l.b16 %v35
  %v272 = vunpack.c.h.b16 %v35
  %v273 = vunpack.c.l.b16 %v36
  %v274 = vunpack.c.h.b16 %v36
  %v275 = vunpack.c.l.b16 %v37
  %v276 = vunpack.c.h.b16 %v37
  %v277 = vunpack.c.l.b16 %v38
  %v278 = vunpack.c.h.b16 %v38
  %v279 = vunpack.c.l.b16 %v39
  %v280 = vunpack.c.h.b16 %v39
  %v281 = vunpack.c.l.b16 %v40
  %v282 = vunpack.c.h.b16 %v40
  %v283 = vunpack.c.l.b16 %v41
  %v284 = vunpack.c.h.b16 %v41
  %v285 = vunpack.c.l.b16 %v42
  %v286 = vunpack.c.h.b16 %v42
  %v287 = vunpack.c.l.b16 %v43
  %v288 = vunpack.c.h.b16 %v43
  %v289 = vunpack.c.l.b16 %v44
  %v290 = vunpack.c.h.b16 %v44
  %v291 = vunpack.c.l.b16 %v45
  %v292 = vunpack.c.h.b16 %v45
  %v293 = vunpack.c.l.b16 %v46
  %v294 = vunpack.c.h.b16 %v46
  %v295 = vunpack.c.l.b16 %v47
  %v296 = vunpack.c.h.b16 %v47
  %v297 = vunpack.c.l.b16 %v48
  %v298 = vunpack.c.h.b16 %v48
  %v299 = vunpack.c.l.b16 %v49
  %v300 = vunpack.c.h.b16 %v49
  %v301 = vunpack.c.l.b16 %v50
  %v302 = vunpack.c.h.b16 %v50
  %v303 = vunpack.c.l.b16 %v51
  %v304 = vunpack.c.h.b16 %v51
  %v305 = vunpack.c.l.b16 %v52
  %v306 = vunpack.c.h.b16 %v52
  %v307 = vunpack.c.l.b16 %v53
  %v308 = vunpack.c.h.b16 %v53
  %v309 = vunpack.c.l.b16 %v54
  %v310 = vunpack.c.h.b16 %v54
  %v311 = vunpack.c.l.b16 %v55
  %v312 = vunpack.c.h.b16 %v55
  %v313 = vunpack.c.l.b16 %v56
  %v314 = vunpack.c.h.b16 %v56
  %v315 = vunpack.c.l.b16 %v57
  %v316 = vunpack.c.h.b16 %v57
  %v317 = vunpack.c.l.b16 %v58
  %v318 = vunpack.c.h.b16 %v58
  %v319 = vunpack.c.l.b16 %v59
  %v320 = vunpack.c.h.b16 %v59
  %v321 = vunpack.c.l.b16 %v60
  %v322 = vunpack.c.h.b16 %v60
  %v323 = vunpack.c.l.b16 %v61
  %v324 = vunpack.c.h.b16 %v61
  %v325 = vunpack.c.l.b16 %v62
  %v326 = vunpack.c.h.b16 %v62
  %v327 = vunpack.c.l.b16 %v63
  %v328 = vunpack.c.h.b16 %v63
  %v329 = vunpack.c.l.b16 %v64
  %v330 = vunpack.c.h.b16 %v64
  %v331 = vunpack.c.l.b16 %v65
  %v332 = vunpack.c.h.b16 %v65
  %v333 = vunpack.c.l.b16 %v66
  %v334 = vunpack.c.h.b16 %v66
  %v335 = vunpack.c.l.b16 %v67
  %v336 = vunpack.c.h.b16 %v67
  %v337 = vunpack.c.l.b16 %v68
  %v338 = vunpack.c.h.b16 %v68
  %v339 = vunpack.c.l.b16 %v69
  %v340 = vunpack.c.h.b16 %v69
  %v341 = vunpack.c.l.b16 %v70
  %v342 = vunpack.c.h.b16 %v70
  %v343 = vunpack.c.l.b16 %v71
  %v344 = vunpack.c.h.b16 %v71
  %v345 = vunpack.c.l.b16 %v72
  %v346 = vunpack.c.h.b16 %v72
  %v347 = vunpack.c.l.b16 %v73
  %v348 = vunpack.c.h.b16 %v73
  %v349 = vunpack.c.l.b16 %v74
  %v350 = vunpack.c.h.b16 %v74
  %v351 = vunpack.c.l.b16 %v75
  %v352 = vunpack.c.h.b16 %v75
  %v353 = vunpack.c.l.b16 %v76
  %v354 = vunpack.c.h.b16 %v76
  %v355 = vunpack.c.l.b16 %v77
  %v356 = vunpack.c.h.b16 %v77
  %v357 = vunpack.c.l.b16 %v78
  %v358 = vunpack.c.h.b16 %v78
  %v359 = vunpack.c.l.b16 %v79
  %v360 = vunpack.c.h.b16 %v79
  %v361 = vunpack.c.l.b16 %v80
  %v362 = vunpack.c.h.b16 %v80
  %v363 = vunpack.c.l.b16 %v81
  %v364 = vunpack.c.h.b16 %v81
  %v365 = vunpack.c.l.b16 %v82
  %v366 = vunpack.c.h.b16 %v82
  %v367 = vunpack.c.l.b16 %v83
  %v368 = vunpack.c.h.b16 %v83
  %v369 = vunpack.c.l.b16 %v84
  %v370 = vunpack.c.h.b16 %v84
  %v371 = vunpack.c.l.b16 %v85
  %v372 = vunpack.c.h.b16 %v85
  %v373 = vunpack.c.l.b16 %v86
  %v374 = vunpack.c.h.b16 %v86
  %v375 = vunpack.c.l.b16 %v87
  %v376 = vunpack.c.h.b16 %v87
  %v377 = vunpack.c.l.b16 %v88
  %v378 = vunpack.c.h.b16 %v88
  %v379 = vunpack.c.l.b16 %v89
  %v380 = vunpack.c.h.b16 %v89
  %v381 = vunpack.c.l.b16 %v90
  %v382 = vunpack.c.h.b16 %v90
  %v383 = vunpack.c.l.b16 %v91
  %v384 = vunpack.c.h.b16 %v91
  %v385 = vunpack.c.l.b16 %v92
  %v386 = vunpack.c.h.b16 %v92
  %v387 = vunpack.c.l.b16 %v93
  %v388 = vunpack.c.h.b16 %v93
  %v389 = vunpack.c.l.b16 %v94
  %v390 = vunpack.c.h.b16 %v94
  %v391 = vunpack.c.l.b16 %v95
  %v392 = vunpack.c.h.b16 %v95
  %v393 = vunpack.c.l.b16 %v96
  %v394 = vunpack.c.h.b16 %v96
  %v395 = vunpack.c.l.b16 %v97
  %v396 = vunpack.c.h.b16 %v97
  %v397 = vunpack.c.l.b16 %v98
  %v398 = vunpack.c.h.b16 %v98
  %v399 = vunpack.c.l.b16 %v99
  %v400 = vunpack.c.h.b16 %v99
  %v401 = vunpack.c.l.b16 %v100
  %v402 = vunpack.c.h.b16 %v100
  %v403 = vunpack.c.l.b16 %v101
  %v404 = vunpack.c.h.b16 %v101
  %v405 = vunpack.c.l.b16 %v102
  %v406 = vunpack.c.h.b16 %v102
  %v407 = vunpack.c.l.b16 %v103
  %v408 = vunpack.c.h.b16 %v103
  %v409 = vunpack.c.l.b16 %v104
  %v410 = vunpack.c.h.b16 %v104
  %v411 = vunpack.c.l.b16 %v105
  %v412 = vunpack.c.h.b16 %v105
  %v413 = vunpack.c.l.b16 %v106
  %v414 = vunpack.c.h.b16 %v106
  %v415 = vunpack.c.l.b16 %v107
  %v416 = vunpack.c.h.b16 %v107
  %v417 = vunpack.c.l.b16 %v108
  %v418 = vunpack.c.h.b16 %v108
  %v419 = vunpack.c.l.b16 %v109
  %v420 = vunpack.c.h.b16 %v109
  %v421 = vunpack.c.l.b16 %v110
  %v422 = vunpack.c.h.b16 %v110
  %v423 = vunpack.c.l.b16 %v111
  %v424 = vunpack.c.h.b16 %v111
  %v425 = vunpack.c.l.b16 %v112
  %v426 = vunpack.c.h.b16 %v112
  %v427 = vunpack.c.l.b16 %v113
  %v428 = vunpack.c.h.b16 %v113
  %v429 = vunpack.c.l.b16 %v114
  %v430 = vunpack.c.h.b16 %v114
  %v431 = vunpack.c.l.b16 %v115
  %v432 = vunpack.c.h.b16 %v115
  %v433 = vunpack.c.l.b16 %v116
  %v434 = vunpack.c.h.b16 %v116
  %v435 = vunpack.c.l.b16 %v117
  %v436 = vunpack.c.h.b16 %v117
  %v437 = vunpack.c.l.b16 %v118
  %v438 = vunpack.c.h.b16 %v118
  %v439 = vunpack.c.l.b16 %v119
  %v440 = vunpack.c.h.b16 %v119
  %v441 = vunpack.c.l.b16 %v120
  %v442 = vunpack.c.h.b16 %v120
  %v443 = vunpack.c.l.b16 %v121
  %v444 = vunpack.c.h.b16 %v121
  %v445 = vunpack.c.l.b16 %v122
  %v446 = vunpack.c.h.b16 %v122
  %v447 = vunpack.c.l.b16 %v123
  %v448 = vunpack.c.h.b16 %v123
  %v449 = vunpack.c.l.b16 %v124
  %v450 = vunpack.c.h.b16 %v124
  %v451 = vunpack.c.l.b16 %v125
  %v452 = vunpack.c.h.b16 %v125
  %v453 = vunpack.c.l.b16 %v126
  %v454 = vunpack.c.h.b16 %v126
  %v455 = vunpack.c.l.b16 %v127
  %v456 = vunpack.c.h.b16 %v127
  %v457 = vunpack.c.l.b16 %v128
  %v458 = vunpack.c.h.b16 %v128
  %v459 = vpack.c.b16 %v265, %v263
  %v460 = vpack.c.b16 %v266, %v264
  %v461 = vpack.c.b16 %v269, %v267
  %v462 = vpack.c.b16 %v270, %v268
  %v463 = vpack.c.b16 %v273, %v271
  %v464 = vpack.c.b16 %v274, %v272
  %v465 = vpack.c.b16 %v277, %v275
  %v466 = vpack.c.b16 %v278, %v276
  %v467 = vpack.c.b16 %v281, %v279
  %v468 = vpack.c.b16 %v282, %v280
  %v469 = vpack.c.b16 %v285, %v283
  %v470 = vpack.c.b16 %v286, %v284
  %v471 = vpack.c.b16 %v289, %v287
  %v472 = vpack.c.b16 %v290, %v288
  %v473 = vpack.c.b16 %v293, %v291
  %v474 = vpack.c.b16 %v294, %v292
  %v475 = vpack.c.b16 %v297, %v295
  %v476 = vpack.c.b16 %v298, %v296
  %v477 = vpack.c.b16 %v301, %v299
  %v478 = vpack.c.b16 %v302, %v300
  %v479 = vpack.c.b16 %v305, %v303
  %v480 = vpack.c.b16 %v306, %v304
  %v481 = vpack.c.b16 %v309, %v307
  %v482 = vpack.c.b16 %v310, %v308
  %v483 = vpack.c.b16 %v313, %v311
  %v484 = vpack.c.b16 %v314, %v312
  %v485 = vpack.c.b16 %v317, %v315
  %v486 = vpack.c.b16 %v318, %v316
  %v487 = vpack.c.b16 %v321, %v319
  %v488 = vpack.c.b16 %v322, %v320
  %v489 = vpack.c.b16 %v325, %v323
  %v490 = vpack.c.b16 %v326, %v324
  %v491 = vpack.c.b16 %v329, %v327
  %v492 = vpack.c.b16 %v330, %v328
  %v493 = vpack.c.b16 %v333, %v331
  %v494 = vpack.c.b16 %v334, %v332
  %v495 = vpack.c.b16 %v337, %v335
  %v496 = vpack.c.b16 %v338, %v336
  %v497 = vpack.c.b16 %v341, %v339
  %v498 = vpack.c.b16 %v342, %v340
  %v499 = vpack.c.b16 %v345, %v343
  %v500 = vpack.c.b16 %v346, %v344
  %v501 = vpack.c.b16 %v349, %v347
  %v502 = vpack.c.b16 %v350, %v348
  %v503 = vpack.c.b16 %v353, %v351
  %v504 = vpack.c.b16 %v354, %v352
  %v505 = vpack.c.b16 %v357, %v355
  %v506 = vpack.c.b16 %v358, %v356
  %v507 = vpack.c.b16 %v361, %v359
  %v508 = vpack.c.b16 %v362, %v360
  %v509 = vpack.c.b16 %v365, %v363
  %v510 = vpack.c.b16 %v366, %v364
  %v511 = vpack.c.b16 %v369, %v367
  %v512 = vpack.c.b16 %v370, %v368
  %v513 = vpack.c.b16 %v373, %v371
  %v514 = vpack.c.b16 %v374, %v372
  %v515 = vpack.c.b16 %v377, %v375
  %v516 = vpack.c.b16 %v378, %v376
  %v517 = vpack.c.b16 %v381, %v379
  %v518 = vpack.c.b16 %v382, %v380
  %v519 = vpack.c.b16 %v385, %v383
  %v520 = vpack.c.b16 %v386, %v384
  %v521 = vpack.c.b16 %v389, %v387
  %v522 = vpack.c.b16 %v390, %v388
  %v523 = vpack.c.b16 %v393, %v391
  %v524 = vpack.c.b16 %v394, %v392
  %v525 = vpack.c.b16 %v397, %v395
  %v526 = vpack.c.b16 %v398, %v396
  %v527 = vpack.c.b16 %v401, %v399
  %v528 = vpack.c.b16 %v402, %v400
  %v529 = vpack.c.b16 %v405, %v403
  %v530 = vpack.c.b16 %v406, %v404
  %v531 = vpack.c.b16 %v409, %v407
  %v532 = vpack.c.b16 %v410, %v408
  %v533 = vpack.c.b16 %v413, %v411
  %v534 = vpack.c.b16 %v414, %v412
  %v535 = vpack.c.b16 %v417, %v415
  %v536 = vpack.c.b16 %v418, %v416
  %v537 = vpack.c.b16 %v421, %v419
  %v538 = vpack.c.b16 %v422, %v420
  %v539 = vpack.c.b16 %v425, %v423
  %v540 = vpack.c.b16 %v426, %v424
  %v541 = vpack.c.b16 %v429, %v427
  %v542 = vpack.c.b16 %v430, %v428
  %v543 = vpack.c.b16 %v433, %v431
  %v544 = vpack.c.b16 %v434, %v432
  %v545 = vpack.c.b16 %v437, %v435
  %v546 = vpack.c.b16 %v438, %v436
  %v547 = vpack.c.b16 %v441, %v439
  %v548 = vpack.c.b16 %v442, %v440
  %v549 = vpack.c.b16 %v445, %v443
  %v550 = vpack.c.b16 %v446, %v444
  %v551 = vpack.c.b16 %v449, %v447
  %v552 = vpack.c.b16 %v450, %v448
  %v553 = vpack.c.b16 %v453, %v451
  %v554 = vpack.c.b16 %v454, %v452
  %v555 = vpack.c.b16 %v457, %v455
  %v556 = vpack.c.b16 %v458, %v456
  %vm655 = vcmask 130048
  %v657 = vsel %vm655, %v158, 0
  %659 = vmatprep.subr.bf16.mxu0 %v474
  %660 = vmatpush1.bf16.msra.mxu0 %v473
  %661 = vmatprep.subr.bf16.mxu0 %v472
  %662 = vmatpush1.bf16.msra.mxu0 %v471
  %663 = vmatprep.subr.bf16.mxu0 %v470
  %664 = vmatpush1.bf16.msra.mxu0 %v469
  %665 = vmatprep.subr.bf16.mxu0 %v468
  %666 = vmatpush1.bf16.msra.mxu0 %v467
  %667 = vmatprep.subr.bf16.mxu0 %v466
  %668 = vmatpush1.bf16.msra.mxu0 %v465
  %669 = vmatprep.subr.bf16.mxu0 %v464
  %670 = vmatpush1.bf16.msra.mxu0 %v463
  %671 = vmatprep.subr.bf16.mxu0 %v462
  %672 = vmatpush1.bf16.msra.mxu0 %v461
  %673 = vmatprep.subr.bf16.mxu0 %v460
  %674 = vmatpush1.bf16.msra.mxu0 %v459
  %675 = vmatprep.subr.bf16.mxu0 %v490
  %676 = vmatpush2.bf16.msra.mxu0 %v489
  %677 = vmatprep.subr.bf16.mxu0 %v488
  %678 = vmatpush2.bf16.msra.mxu0 %v487
  %679 = vmatprep.subr.bf16.mxu0 %v486
  %680 = vmatpush2.bf16.msra.mxu0 %v485
  %681 = vmatprep.subr.bf16.mxu0 %v484
  %682 = vmatpush2.bf16.msra.mxu0 %v483
  %683 = vmatprep.subr.bf16.mxu0 %v482
  %684 = vmatpush2.bf16.msra.mxu0 %v481
  %685 = vmatprep.subr.bf16.mxu0 %v480
  %686 = vmatpush2.bf16.msra.mxu0 %v479
  %687 = vmatprep.subr.bf16.mxu0 %v478
  %688 = vmatpush2.bf16.msra.mxu0 %v477
  %689 = vmatprep.subr.bf16.mxu0 %v476
  %690 = vmatpush2.bf16.msra.mxu0 %v475
  %691 = vmatprep.mubr.bf16.mxu0 %v153
  %692 = vmatmul.mubr.bf16.gmra.mxu0 %v152
  %v693 = vpop.f32.mrf.mxu0
  %v694 = vadd.f32 %v134, %v693
  %v695 = vpop.f32.mrf.mxu0
  %v696 = vadd.f32 %v138, %v695
  %v697 = vpop.f32.mrf.mxu0
  %v698 = vpop.f32.mrf.mxu0
  %699 = vdwg.mxu0
  %700 = vmatprep.subr.bf16.mxu0 %v506
  %701 = vmatpush1.bf16.msra.mxu0 %v505
  %702 = vmatprep.subr.bf16.mxu0 %v504
  %703 = vmatpush1.bf16.msra.mxu0 %v503
  %704 = vmatprep.subr.bf16.mxu0 %v502
  %705 = vmatpush1.bf16.msra.mxu0 %v501
  %706 = vmatprep.subr.bf16.mxu0 %v500
  %707 = vmatpush1.bf16.msra.mxu0 %v499
  %708 = vmatprep.subr.bf16.mxu0 %v498
  %709 = vmatpush1.bf16.msra.mxu0 %v497
  %710 = vmatprep.subr.bf16.mxu0 %v496
  %711 = vmatpush1.bf16.msra.mxu0 %v495
  %712 = vmatprep.subr.bf16.mxu0 %v494
  %713 = vmatpush1.bf16.msra.mxu0 %v493
  %714 = vmatprep.subr.bf16.mxu0 %v492
  %715 = vmatpush1.bf16.msra.mxu0 %v491
  %716 = vmatprep.subr.bf16.mxu0 %v522
  %717 = vmatpush2.bf16.msra.mxu0 %v521
  %718 = vmatprep.subr.bf16.mxu0 %v520
  %719 = vmatpush2.bf16.msra.mxu0 %v519
  %720 = vmatprep.subr.bf16.mxu0 %v518
  %721 = vmatpush2.bf16.msra.mxu0 %v517
  %722 = vmatprep.subr.bf16.mxu0 %v516
  %723 = vmatpush2.bf16.msra.mxu0 %v515
  %724 = vmatprep.subr.bf16.mxu0 %v514
  %725 = vmatpush2.bf16.msra.mxu0 %v513
  %726 = vmatprep.subr.bf16.mxu0 %v512
  %727 = vmatpush2.bf16.msra.mxu0 %v511
  %728 = vmatprep.subr.bf16.mxu0 %v510
  %729 = vmatpush2.bf16.msra.mxu0 %v509
  %730 = vmatprep.subr.bf16.mxu0 %v508
  %731 = vmatpush2.bf16.msra.mxu0 %v507
  %732 = vmatprep.mubr.bf16.mxu0 %v155
  %733 = vmatmul.mubr.bf16.gmra.mxu0 %v154
  %v734 = vpop.f32.mrf.mxu0
  %v735 = vadd.f32 %v694, %v734
  %v736 = vpop.f32.mrf.mxu0
  %v737 = vadd.f32 %v696, %v736
  %v738 = vpop.f32.mrf.mxu0
  %v739 = vpop.f32.mrf.mxu0
  %740 = vdwg.mxu0
  %741 = vmatprep.subr.bf16.mxu0 %v538
  %742 = vmatpush1.bf16.msra.mxu0 %v537
  %743 = vmatprep.subr.bf16.mxu0 %v536
  %744 = vmatpush1.bf16.msra.mxu0 %v535
  %745 = vmatprep.subr.bf16.mxu0 %v534
  %746 = vmatpush1.bf16.msra.mxu0 %v533
  %747 = vmatprep.subr.bf16.mxu0 %v532
  %748 = vmatpush1.bf16.msra.mxu0 %v531
  %749 = vmatprep.subr.bf16.mxu0 %v530
  %750 = vmatpush1.bf16.msra.mxu0 %v529
  %751 = vmatprep.subr.bf16.mxu0 %v528
  %752 = vmatpush1.bf16.msra.mxu0 %v527
  %753 = vmatprep.subr.bf16.mxu0 %v526
  %754 = vmatpush1.bf16.msra.mxu0 %v525
  %755 = vmatprep.subr.bf16.mxu0 %v524
  %756 = vmatpush1.bf16.msra.mxu0 %v523
  %757 = vmatprep.subr.bf16.mxu0 %v554
  %758 = vmatpush2.bf16.msra.mxu0 %v553
  %759 = vmatprep.subr.bf16.mxu0 %v552
  %760 = vmatpush2.bf16.msra.mxu0 %v551
  %761 = vmatprep.subr.bf16.mxu0 %v550
  %762 = vmatpush2.bf16.msra.mxu0 %v549
  %763 = vmatprep.subr.bf16.mxu0 %v548
  %764 = vmatpush2.bf16.msra.mxu0 %v547
  %765 = vmatprep.subr.bf16.mxu0 %v546
  %766 = vmatpush2.bf16.msra.mxu0 %v545
  %767 = vmatprep.subr.bf16.mxu0 %v544
  %768 = vmatpush2.bf16.msra.mxu0 %v543
  %769 = vmatprep.subr.bf16.mxu0 %v542
  %770 = vmatpush2.bf16.msra.mxu0 %v541
  %771 = vmatprep.subr.bf16.mxu0 %v540
  %772 = vmatpush2.bf16.msra.mxu0 %v539
  %773 = vmatprep.mubr.bf16.mxu0 %v157
  %774 = vmatmul.mubr.bf16.gmra.mxu0 %v156
  %v775 = vpop.f32.mrf.mxu0
  %v776 = vadd.f32 %v735, %v775
  %v777 = vpop.f32.mrf.mxu0
  %v778 = vadd.f32 %v737, %v777
  %v779 = vpop.f32.mrf.mxu0
  %v780 = vpop.f32.mrf.mxu0
  %781 = vdwg.mxu0
  %782 = vmatprep.subr.bf16.mxu0 0
  %783 = vmatpush1.bf16.msra.mxu0 0
  %784 = vmatprep.subr.bf16.mxu0 0
  %785 = vmatpush1.bf16.msra.mxu0 0
  %786 = vmatprep.subr.bf16.mxu0 0
  %787 = vmatpush1.bf16.msra.mxu0 0
  %788 = vmatprep.subr.bf16.mxu0 0
  %789 = vmatpush1.bf16.msra.mxu0 0
  %790 = vmatprep.subr.bf16.mxu0 0
  %791 = vmatpush1.bf16.msra.mxu0 0
  %792 = vmatprep.subr.bf16.mxu0 0
  %793 = vmatpush1.bf16.msra.mxu0 0
  %794 = vmatprep.subr.bf16.mxu0 0
  %795 = vmatpush1.bf16.msra.mxu0 0
  %796 = vmatprep.subr.bf16.mxu0 %v556
  %797 = vmatpush1.bf16.msra.mxu0 %v555
  %798 = vmatprep.subr.bf16.mxu0 0
  %799 = vmatpush2.bf16.msra.mxu0 0
  %800 = vmatprep.subr.bf16.mxu0 0
  %801 = vmatpush2.bf16.msra.mxu0 0
  %802 = vmatprep.subr.bf16.mxu0 0
  %803 = vmatpush2.bf16.msra.mxu0 0
  %804 = vmatprep.subr.bf16.mxu0 0
  %805 = vmatpush2.bf16.msra.mxu0 0
  %806 = vmatprep.subr.bf16.mxu0 0
  %807 = vmatpush2.bf16.msra.mxu0 0
  %808 = vmatprep.subr.bf16.mxu0 0
  %809 = vmatpush2.bf16.msra.mxu0 0
  %810 = vmatprep.subr.bf16.mxu0 0
  %811 = vmatpush2.bf16.msra.mxu0 0
  %812 = vmatprep.subr.bf16.mxu0 0
  %813 = vmatpush2.bf16.msra.mxu0 0
  %814 = vmatprep.mubr.bf16.mxu0 0
  %815 = vmatmul.mubr.bf16.gmra.mxu0 %v657
  %v816 = vpop.f32.mrf.mxu0
  %v817 = vadd.f32 %v776, %v816
  %v818 = vpop.f32.mrf.mxu0
  %v819 = vadd.f32 %v778, %v818
  %v820 = vpop.f32.mrf.mxu0
  %v821 = vpop.f32.mrf.mxu0
  %822 = vdwg.mxu0
  %v823 = vmax.f32 %v817, 0.0
  %v824 = vmax.f32 %v819, 0.0
  %v825 = vpack.c.bf16 %v823, %v823
  %v826 = vpack.c.bf16 %v824, %v824
  %v827 = vld [vmem:[%s3] sm:$0xf]
  %v828 = vld [vmem:[%s3 + $0x4] sm:$0xf]
  %v829 = vld [vmem:[%s3 + $0x8] sm:$0xf]
  %v830 = vld [vmem:[%s3 + $0xc] sm:$0xf]
  %v831 = vld [vmem:[%s3 + $0x10] sm:$0xf]
  %v832 = vld [vmem:[%s3 + $0x14] sm:$0xf]
  %v833 = vld [vmem:[%s3 + $0x18] sm:$0xf]
  %v834 = vld [vmem:[%s3 + $0x1c] sm:$0xf]
  %v835 = vld [vmem:[%s3 + $0x20] sm:$0xf]
  %v836 = vld [vmem:[%s3 + $0x24] sm:$0xf]
  %v837 = vld [vmem:[%s3 + $0x28] sm:$0xf]
  %v838 = vld [vmem:[%s3 + $0x2c] sm:$0xf]
  %v839 = vld [vmem:[%s3 + $0x30] sm:$0xf]
  %v840 = vld [vmem:[%s3 + $0x34] sm:$0xf]
  %v841 = vld [vmem:[%s3 + $0x38] sm:$0xf]
  %v842 = vld [vmem:[%s3 + $0x3c] sm:$0xf]
  %v843 = vld [vmem:[%s3 + $0x40] sm:$0xf]
  %v844 = vld [vmem:[%s3 + $0x44] sm:$0xf]
  %v845 = vld [vmem:[%s3 + $0x48] sm:$0xf]
  %v846 = vld [vmem:[%s3 + $0x4c] sm:$0xf]
  %v847 = vld [vmem:[%s3 + $0x50] sm:$0xf]
  %v848 = vld [vmem:[%s3 + $0x54] sm:$0xf]
  %v849 = vld [vmem:[%s3 + $0x58] sm:$0xf]
  %v850 = vld [vmem:[%s3 + $0x5c] sm:$0xf]
  %v851 = vld [vmem:[%s3 + $0x60] sm:$0xf]
  %v852 = vld [vmem:[%s3 + $0x64] sm:$0xf]
  %v853 = vld [vmem:[%s3 + $0x68] sm:$0xf]
  %v854 = vld [vmem:[%s3 + $0x6c] sm:$0xf]
  %v855 = vld [vmem:[%s3 + $0x70] sm:$0xf]
  %v856 = vld [vmem:[%s3 + $0x74] sm:$0xf]
  %v857 = vld [vmem:[%s3 + $0x78] sm:$0xf]
  %v858 = vld [vmem:[%s3 + $0x7c] sm:$0xf]
  %v859 = vld [vmem:[%s4] sm:$0x1]
  %v861 = vlaneseq
  %v862 = vshrl.u32 %v861, 7
  %v863 = vsub.s32 0, %v862
  %v864 = vrot.slane %v859, %v863
  %v898 = vunpack.c.l.b16 %v827
  %v899 = vunpack.c.l.b16 %v828
  %v900 = vunpack.c.l.b16 %v829
  %v901 = vunpack.c.l.b16 %v830
  %v902 = vunpack.c.l.b16 %v831
  %v903 = vunpack.c.l.b16 %v832
  %v904 = vunpack.c.l.b16 %v833
  %v905 = vunpack.c.l.b16 %v834
  %v906 = vunpack.c.l.b16 %v835
  %v907 = vunpack.c.l.b16 %v836
  %v908 = vunpack.c.l.b16 %v837
  %v909 = vunpack.c.l.b16 %v838
  %v910 = vunpack.c.l.b16 %v839
  %v911 = vunpack.c.l.b16 %v840
  %v912 = vunpack.c.l.b16 %v841
  %v913 = vunpack.c.l.b16 %v842
  %v914 = vunpack.c.l.b16 %v843
  %v915 = vunpack.c.l.b16 %v844
  %v916 = vunpack.c.l.b16 %v845
  %v917 = vunpack.c.l.b16 %v846
  %v918 = vunpack.c.l.b16 %v847
  %v919 = vunpack.c.l.b16 %v848
  %v920 = vunpack.c.l.b16 %v849
  %v921 = vunpack.c.l.b16 %v850
  %v922 = vunpack.c.l.b16 %v851
  %v923 = vunpack.c.l.b16 %v852
  %v924 = vunpack.c.l.b16 %v853
  %v925 = vunpack.c.l.b16 %v854
  %v926 = vunpack.c.l.b16 %v855
  %v927 = vunpack.c.l.b16 %v856
  %v928 = vunpack.c.l.b16 %v857
  %v929 = vunpack.c.l.b16 %v858
  %v930 = vpack.c.b16 %v899, %v898
  %v931 = vpack.c.b16 %v901, %v900
  %v932 = vpack.c.b16 %v903, %v902
  %v933 = vpack.c.b16 %v905, %v904
  %v934 = vpack.c.b16 %v907, %v906
  %v935 = vpack.c.b16 %v909, %v908
  %v936 = vpack.c.b16 %v911, %v910
  %v937 = vpack.c.b16 %v913, %v912
  %v938 = vpack.c.b16 %v915, %v914
  %v939 = vpack.c.b16 %v917, %v916
  %v940 = vpack.c.b16 %v919, %v918
  %v941 = vpack.c.b16 %v921, %v920
  %v942 = vpack.c.b16 %v923, %v922
  %v943 = vpack.c.b16 %v925, %v924
  %v944 = vpack.c.b16 %v927, %v926
  %v945 = vpack.c.b16 %v929, %v928
  %962 = vmatprep.subr.bf16.mxu0 0
  %963 = vmatpush1.bf16.msra.mxu0 %v937
  %964 = vmatprep.subr.bf16.mxu0 0
  %965 = vmatpush1.bf16.msra.mxu0 %v936
  %966 = vmatprep.subr.bf16.mxu0 0
  %967 = vmatpush1.bf16.msra.mxu0 %v935
  %968 = vmatprep.subr.bf16.mxu0 0
  %969 = vmatpush1.bf16.msra.mxu0 %v934
  %970 = vmatprep.subr.bf16.mxu0 0
  %971 = vmatpush1.bf16.msra.mxu0 %v933
  %972 = vmatprep.subr.bf16.mxu0 0
  %973 = vmatpush1.bf16.msra.mxu0 %v932
  %974 = vmatprep.subr.bf16.mxu0 0
  %975 = vmatpush1.bf16.msra.mxu0 %v931
  %976 = vmatprep.subr.bf16.mxu0 0
  %977 = vmatpush1.bf16.msra.mxu0 %v930
  %978 = vmatprep.subr.bf16.mxu0 0
  %979 = vmatpush2.bf16.msra.mxu0 %v945
  %980 = vmatprep.subr.bf16.mxu0 0
  %981 = vmatpush2.bf16.msra.mxu0 %v944
  %982 = vmatprep.subr.bf16.mxu0 0
  %983 = vmatpush2.bf16.msra.mxu0 %v943
  %984 = vmatprep.subr.bf16.mxu0 0
  %985 = vmatpush2.bf16.msra.mxu0 %v942
  %986 = vmatprep.subr.bf16.mxu0 0
  %987 = vmatpush2.bf16.msra.mxu0 %v941
  %988 = vmatprep.subr.bf16.mxu0 0
  %989 = vmatpush2.bf16.msra.mxu0 %v940
  %990 = vmatprep.subr.bf16.mxu0 0
  %991 = vmatpush2.bf16.msra.mxu0 %v939
  %992 = vmatprep.subr.bf16.mxu0 0
  %993 = vmatpush2.bf16.msra.mxu0 %v938
  %994 = vmatprep.mubr.bf16.mxu0 %v826
  %995 = vmatmul.mubr.bf16.gmra.mxu0 %v825
  %v996 = vpop.f32.mrf.mxu0
  %v997 = vadd.f32 %v864, %v996
  %v998 = vpop.f32.mrf.mxu0
  %v999 = vpop.f32.mrf.mxu0
  %v1000 = vpop.f32.mrf.mxu0
  %1001 = vdwg.mxu0
  %v1002 = vmax.f32 %v997, 0.0
  %v1003 = vpack.c.bf16 %v1002, %v1002
  %v1004 = vld [vmem:[%s5] sm:$0xf]
  %v1005 = vld [vmem:[%s5 + $0x4] sm:$0xf]
  %v1006 = vld [vmem:[%s5 + $0x8] sm:$0xf]
  %v1007 = vld [vmem:[%s5 + $0xc] sm:$0xf]
  %v1008 = vld [vmem:[%s5 + $0x10] sm:$0xf]
  %v1009 = vld [vmem:[%s5 + $0x14] sm:$0xf]
  %v1010 = vld [vmem:[%s5 + $0x18] sm:$0xf]
  %v1011 = vld [vmem:[%s5 + $0x1c] sm:$0xf]
  %v1012 = vld [vmem:[%s5 + $0x20] sm:$0xf]
  %v1013 = vld [vmem:[%s5 + $0x24] sm:$0xf]
  %v1014 = vld [vmem:[%s5 + $0x28] sm:$0xf]
  %v1015 = vld [vmem:[%s5 + $0x2c] sm:$0xf]
  %v1016 = vld [vmem:[%s5 + $0x30] sm:$0xf]
  %v1017 = vld [vmem:[%s5 + $0x34] sm:$0xf]
  %v1018 = vld [vmem:[%s5 + $0x38] sm:$0xf]
  %v1019 = vld [vmem:[%s5 + $0x3c] sm:$0xf]
  %v1020 = vld [vmem:[%s6] sm:$0x1]
  %v1022 = vlaneseq
  %v1023 = vshrl.u32 %v1022, 7
  %v1024 = vsub.s32 0, %v1023
  %v1025 = vrot.slane %v1020, %v1024
  %v1043 = vunpack.c.l.b16 %v1004
  %v1044 = vunpack.c.l.b16 %v1005
  %v1045 = vunpack.c.l.b16 %v1006
  %v1046 = vunpack.c.l.b16 %v1007
  %v1047 = vunpack.c.l.b16 %v1008
  %v1048 = vunpack.c.l.b16 %v1009
  %v1049 = vunpack.c.l.b16 %v1010
  %v1050 = vunpack.c.l.b16 %v1011
  %v1051 = vunpack.c.l.b16 %v1012
  %v1052 = vunpack.c.l.b16 %v1013
  %v1053 = vunpack.c.l.b16 %v1014
  %v1054 = vunpack.c.l.b16 %v1015
  %v1055 = vunpack.c.l.b16 %v1016
  %v1056 = vunpack.c.l.b16 %v1017
  %v1057 = vunpack.c.l.b16 %v1018
  %v1058 = vunpack.c.l.b16 %v1019
  %v1059 = vpack.c.b16 %v1044, %v1043
  %v1060 = vpack.c.b16 %v1046, %v1045
  %v1061 = vpack.c.b16 %v1048, %v1047
  %v1062 = vpack.c.b16 %v1050, %v1049
  %v1063 = vpack.c.b16 %v1052, %v1051
  %v1064 = vpack.c.b16 %v1054, %v1053
  %v1065 = vpack.c.b16 %v1056, %v1055
  %v1066 = vpack.c.b16 %v1058, %v1057
  %1075 = vmatprep.subr.bf16.mxu0 0
  %1076 = vmatpush1.bf16.msra.mxu0 %v1066
  %1077 = vmatprep.subr.bf16.mxu0 0
  %1078 = vmatpush1.bf16.msra.mxu0 %v1065
  %1079 = vmatprep.subr.bf16.mxu0 0
  %1080 = vmatpush1.bf16.msra.mxu0 %v1064
  %1081 = vmatprep.subr.bf16.mxu0 0
  %1082 = vmatpush1.bf16.msra.mxu0 %v1063
  %1083 = vmatprep.subr.bf16.mxu0 0
  %1084 = vmatpush1.bf16.msra.mxu0 %v1062
  %1085 = vmatprep.subr.bf16.mxu0 0
  %1086 = vmatpush1.bf16.msra.mxu0 %v1061
  %1087 = vmatprep.subr.bf16.mxu0 0
  %1088 = vmatpush1.bf16.msra.mxu0 %v1060
  %1089 = vmatprep.subr.bf16.mxu0 0
  %1090 = vmatpush1.bf16.msra.mxu0 %v1059
  %1091 = vmatprep.subr.bf16.mxu0 0
  %1092 = vmatpush2.bf16.msra.mxu0 0
  %1093 = vmatprep.subr.bf16.mxu0 0
  %1094 = vmatpush2.bf16.msra.mxu0 0
  %1095 = vmatprep.subr.bf16.mxu0 0
  %1096 = vmatpush2.bf16.msra.mxu0 0
  %1097 = vmatprep.subr.bf16.mxu0 0
  %1098 = vmatpush2.bf16.msra.mxu0 0
  %1099 = vmatprep.subr.bf16.mxu0 0
  %1100 = vmatpush2.bf16.msra.mxu0 0
  %1101 = vmatprep.subr.bf16.mxu0 0
  %1102 = vmatpush2.bf16.msra.mxu0 0
  %1103 = vmatprep.subr.bf16.mxu0 0
  %1104 = vmatpush2.bf16.msra.mxu0 0
  %1105 = vmatprep.subr.bf16.mxu0 0
  %1106 = vmatpush2.bf16.msra.mxu0 0
  %1107 = vmatprep.mubr.bf16.mxu0 0
  %1108 = vmatmul.mubr.bf16.gmra.mxu0 %v1003
  %v1109 = vpop.f32.mrf.mxu0
  %v1110 = vadd.f32 %v1025, %v1109
  %v1111 = vpop.f32.mrf.mxu0
  %v1112 = vpop.f32.mrf.mxu0
  %v1113 = vpop.f32.mrf.mxu0
  %1114 = vdwg.mxu0
  %1115 = vst [vmem:[%s7] sm:$0xff] %v1110
  // Predicated region
  $region30: #{topmodel_forward.1} parent=0 // pred_check
    _
  $region31: #{topmodel_forward.1} parent=0 // pred_check_branch
    %1117 = sbr.rel (0) target = $region33
  $region32: #{topmodel_forward.1} parent=0 // pred_region
    _
  $region33: #{topmodel_forward.1} parent=0 // pred_fallthru
    _
  // Predicated region
  $region34: #{topmodel_forward.1} parent=0 // pred_check
    _
  $region35: #{topmodel_forward.1} parent=0 // pred_check_branch
    %1119 = sbr.rel (0) target = $region37
  $region36: #{topmodel_forward.1} parent=0 // pred_region
    _
  $region37: #{topmodel_forward.1} parent=0 // pred_fallthru
    _

</llo_original>
